<compile_context>
chip_gen: v5e
topology: v5e:2x2
jax: 0.10.0
libtpu: 0.0.40
codegen_flags: <defaults>
</compile_context>

<pallas_src>
import functools

import jax
import jax.numpy as jnp
from jax.experimental import pallas as pl
from jax.experimental.pallas import tpu as pltpu


# --------------------------------------------------------------------------- #
# Kernels
# --------------------------------------------------------------------------- #
def _var_head_cin_kernel(x_ref, w_ref, b_ref, o_ref, acc_ref, *, inv_s):
    """Primary path: reduction tiled along C_in, full S per block.

    x_ref  : (tile_n, tile_c, S)   current C_in slab (contiguous in HBM per row)
    w_ref  : (tile_c, C_out) f32   matching weight slab
    b_ref  : (1, C_out)      f32   bias (constant block index -> resident)
    o_ref  : (tile_n, C_out)       output block (resident across the C axis)
    acc_ref: (tile_n, C_out) f32   running partial matmul
    """
    c = pl.program_id(1)

    @pl.when(c == 0)
    def _():
        acc_ref[...] = jnp.zeros_like(acc_ref)

    # Mean over S (lane-axis reduce, widened to f32 tile-locally), then a thin
    # MXU matmul against this C_in slab of the weight.  No mask: the S axis is
    # the full extent and tile_c divides C_in exactly.
    pooled = jnp.sum(x_ref[...].astype(jnp.float32), axis=-1) * inv_s
    acc_ref[...] += jnp.dot(pooled, w_ref[...], preferred_element_type=jnp.float32)

    @pl.when(c == pl.num_programs(1) - 1)
    def _():
        o_ref[...] = (acc_ref[...] + b_ref[...]).astype(o_ref.dtype)


def _var_head_s_kernel(x_ref, w_ref, b_ref, o_ref, acc_ref, *, s_total, tile_s):
    """Fallback path: reduction tiled along S (only when a full-S slab overflows VMEM).

    x_ref  : (tile_n, C_in, tile_s)
    w_ref  : (C_in, C_out) f32     full weight (constant block index -> resident)
    b_ref  : (1, C_out)    f32
    o_ref  : (tile_n, C_out)
    acc_ref: (tile_n, C_in) f32    running SUM over S
    """
    s = pl.program_id(1)
    last = pl.num_programs(1) - 1

    @pl.when(s == 0)
    def _():
        acc_ref[...] = jnp.zeros_like(acc_ref)

    if s_total % tile_s == 0:
        acc_ref[...] += jnp.sum(x_ref[...].astype(jnp.float32), axis=-1)
    else:
        # Ragged last tile: pay for the mask ONLY on the final step, built from a
        # (1, 1, tile_s) lane iota (broadcast inside the where), not a full-tile iota.
        @pl.when(s < last)
        def _():
            acc_ref[...] += jnp.sum(x_ref[...].astype(jnp.float32), axis=-1)

        @pl.when(s == last)
        def _():
            lane = jax.lax.broadcasted_iota(jnp.int32, (1, 1, tile_s), 2)
            valid = (s * tile_s + lane) < s_total
            xm = jnp.where(valid, x_ref[...].astype(jnp.float32), 0.0)
            acc_ref[...] += jnp.sum(xm, axis=-1)

    @pl.when(s == last)
    def _():
        pooled = acc_ref[...] * (1.0 / float(s_total))       # mean over true S
        out = jnp.dot(pooled, w_ref[...], preferred_element_type=jnp.float32)
        o_ref[...] = (out + b_ref[...]).astype(o_ref.dtype)


# --------------------------------------------------------------------------- #
# Tiling / VMEM budgeting helpers
# --------------------------------------------------------------------------- #
def _vmem_capacity_bytes():
    """Physical per-core VMEM (128 MiB v5e/v6e, 64 MiB v7x); conservative fallback."""
    try:
        cap = int(pltpu.get_tpu_info().vmem_capacity_bytes)
        if cap > 0:
            return cap
    except Exception:
        pass
    return 64 << 20  # assume the smallest generation (v7x) if the query fails


def _pick_tile_n(n):
    # Output block is (tile_n, C_out): sublane dim must be a multiple of 8 or == N.
    if n % 8 != 0:
        return n
    # Prefer >=2 N-blocks (the 'parallel' axis is what gets sharded across v7x's
    # 2 TensorCores) while keeping up to 64 rows per block for dense finalizes.
    for t in (64, 32, 16, 8):
        if t <= n and n % t == 0 and n // t >= 2:
            return t
    return n


def _pick_tile_c(c_in, tile_n, row_bytes, budget):
    """Largest C_in tile (exact divisor, multiple of 8) whose x block fits `budget`."""
    if tile_n * c_in * row_bytes <= budget:
        return c_in
    if c_in % 8 != 0:
        return 0
    best = 0
    for t in range(8, c_in, 8):
        if c_in % t == 0 and tile_n * t * row_bytes <= budget:
            best = t
    return best


# --------------------------------------------------------------------------- #
# Public wrapper
# --------------------------------------------------------------------------- #
def var_head_forward(x, weight, bias, *, x_block_bytes=None, vmem_limit_bytes=None):
    """x: (N, C_in, T, H, W); weight: (C_out, C_in, 1, 1, 1); bias: (C_out,).

    Returns Conv3d_1x1x1(AdaptiveAvgPool3d(x)) of shape (N, C_out, 1, 1, 1).
    """
    N, C_in, T, H, W = x.shape
    C_out = weight.shape[0]
    S = T * H * W
    itemsize = jnp.dtype(x.dtype).itemsize

    # Free native-layout reshape of the big tensor; tiny param prep in f32 so the
    # kernel never casts the weight (single-pass f32 MXU matmul).
    x_ncs = x.reshape(N, C_in, S)                                       # (N, C_in, S)
    w_kc = jnp.transpose(weight.reshape(C_out, C_in), (1, 0)).astype(jnp.float32)
    b_2d = bias.reshape(1, C_out).astype(jnp.float32)

    tile_n = _pick_tile_n(N)

    # ---- Generation-aware VMEM budget ------------------------------------- #
    vmem_cap = _vmem_capacity_bytes()
    if vmem_limit_bytes is None:
        # ~3/4 of physical VMEM: ~48 MiB on v7x (64 MiB), ~96 MiB on v5e/v6e (128 MiB).
        vmem_limit_bytes = min(vmem_cap * 3 // 4, 100 << 20)
    # Non-x residents, conservatively counted as double-buffered: f32 weight + bias,
    # f32 accumulator, output block, plus slack for compiler-internal scratch.
    fixed = (2 * C_in * C_out * 4 + 2 * C_out * 4
             + tile_n * max(C_in, C_out) * 4
             + 2 * tile_n * C_out * itemsize
             + (2 << 20))
    if x_block_bytes is None:
        # x is double-buffered; ~16 MiB blocks on 64 MiB-VMEM parts, ~32 MiB on 128 MiB.
        per_block_cap = (16 << 20) if vmem_cap <= (64 << 20) else (32 << 20)
        x_block_bytes = max(1 << 20, min((vmem_limit_bytes - fixed) // 2, per_block_cap))

    cost = pl.CostEstimate(
        flops=int(N * C_in * S + 2 * N * C_in * C_out),
        transcendentals=0,
        bytes_accessed=int(x_ncs.size * itemsize + (w_kc.size + b_2d.size) * 4
                           + N * C_out * itemsize),
    )

    row_bytes = S * itemsize
    tile_c = _pick_tile_c(C_in, tile_n, row_bytes, x_block_bytes)
    if tile_c == 0 and tile_n > 8 and N % 8 == 0:
        tile_n = 8                                  # shrink batch tile before giving up on full S
        tile_c = _pick_tile_c(C_in, tile_n, row_bytes, x_block_bytes)

    if tile_c > 0:
        # ---- Primary: C_in-tiled reduction, fully contiguous full-S blocks ---- #
        block_bytes = tile_n * tile_c * row_bytes
        vmem_limit_bytes = max(int(vmem_limit_bytes), int(fixed + 2 * block_bytes))
        grid = (N // tile_n, C_in // tile_c)
        kernel = functools.partial(_var_head_cin_kernel, inv_s=1.0 / float(S))
        in_specs = [
            pl.BlockSpec((tile_n, tile_c, S), lambda n, c: (n, c, 0)),
            pl.BlockSpec((tile_c, C_out), lambda n, c: (c, 0)),
            pl.BlockSpec((1, C_out), lambda n, c: (0, 0)),
        ]
        acc_shape = (tile_n, C_out)
    else:
        # ---- Fallback: S-tiled reduction (very large S), 128-lane multiples ---- #
        lanes = max(1, x_block_bytes // (tile_n * C_in * itemsize * 128))
        tile_s = int(lanes) * 128
        block_bytes = tile_n * C_in * tile_s * itemsize
        vmem_limit_bytes = max(int(vmem_limit_bytes), int(fixed + 2 * block_bytes))
        grid = (N // tile_n, pl.cdiv(S, tile_s))
        kernel = functools.partial(_var_head_s_kernel, s_total=S, tile_s=tile_s)
        in_specs = [
            pl.BlockSpec((tile_n, C_in, tile_s), lambda n, s: (n, 0, s)),
            pl.BlockSpec((C_in, C_out), lambda n, s: (0, 0)),
            pl.BlockSpec((1, C_out), lambda n, s: (0, 0)),
        ]
        acc_shape = (tile_n, C_in)

    out = pl.pallas_call(
        kernel,
        out_shape=jax.ShapeDtypeStruct((N, C_out), x.dtype),
        grid_spec=pltpu.PrefetchScalarGridSpec(
            num_scalar_prefetch=0,
            grid=grid,
            in_specs=in_specs,
            out_specs=pl.BlockSpec((tile_n, C_out), lambda n, r: (n, 0)),
            scratch_shapes=[pltpu.VMEM(acc_shape, jnp.float32)],
        ),
        compiler_params=pltpu.CompilerParams(
            dimension_semantics=("parallel", "arbitrary"),
            vmem_limit_bytes=int(vmem_limit_bytes)),
        cost_estimate=cost,
    )(x_ncs, w_kc, b_2d)

    return out.reshape(N, C_out, 1, 1, 1)


# --------------------------------------------------------------------------- #
# Pure-JAX reference and self-test
# --------------------------------------------------------------------------- #
def _reference_forward(x, weight, bias):
    pooled = jnp.mean(x.astype(jnp.float32), axis=(2, 3, 4))           # (N, C_in)
    w = weight.reshape(weight.shape[0], weight.shape[1]).astype(jnp.float32)
    out = pooled @ w.T + bias.astype(jnp.float32)                      # (N, C_out)
    return out.reshape(x.shape[0], weight.shape[0], 1, 1, 1)


if __name__ == "__main__":
    root = jax.random.PRNGKey(0)
    k1, k2, k3 = jax.random.split(root, 3)

    def make_case(key, n, c_in, c_out, t, h, w):
        kx, kw, kb = jax.random.split(key, 3)
        bound = 1.0 / (c_in ** 0.5)
        x = jax.random.normal(kx, (n, c_in, t, h, w), dtype=jnp.float32)
        weight = jax.random.uniform(kw, (c_out, c_in, 1, 1, 1), jnp.float32, -bound, bound)
        bias = jax.random.uniform(kb, (c_out,), jnp.float32, -bound, bound)
        return x, weight, bias

    # --- Test 1: defaults -> single-step path (full C_in, full S block). ---
    x, w, b = make_case(k1, 2, 32, 16, 2, 4, 4)
    out = jax.block_until_ready(var_head_forward(x, w, b))
    ref = _reference_forward(x, w, b)
    assert out.shape == (2, 16, 1, 1, 1), out.shape
    assert jnp.allclose(out, ref.astype(out.dtype), atol=1e-5, rtol=1e-5), (
        "mismatch vs reference (single-block path)")

    # --- Test 2: force the C_in-tiled primary path (tile_c=8, 2 N-blocks). ---
    x2, w2, b2 = make_case(k2, 16, 32, 16, 2, 8, 8)                    # S = 128
    out2 = jax.block_until_ready(
        var_head_forward(x2, w2, b2, x_block_bytes=8 * 8 * 128 * 4))
    ref2 = _reference_forward(x2, w2, b2)
    assert jnp.allclose(out2, ref2.astype(out2.dtype), atol=1e-5, rtol=1e-5), (
        "mismatch vs reference (C_in-tiled path)")

    # --- Test 3: force the S-tiled fallback with a ragged, masked last tile. ---
    x3, w3, b3 = make_case(k3, 2, 8, 16, 3, 10, 10)                    # S = 300 -> 3 tiles of 128
    out3 = jax.block_until_ready(
        var_head_forward(x3, w3, b3, x_block_bytes=2 * 8 * 128 * 4))
    ref3 = _reference_forward(x3, w3, b3)
    assert jnp.allclose(out3, ref3.astype(out3.dtype), atol=1e-5, rtol=1e-5), (
        "mismatch vs reference (S-tiled / ragged path)")

    print("KERNEL_OK")
</pallas_src>

<mosaic_0001>
module attributes {stable_mosaic.version = 11 : i64} {
  func.func @_var_head_cin_kernel(%arg0: i32, %arg1: i32, %arg2: memref<2x32x32xf32, #tpu.memory_space<vmem>>, %arg3: memref<32x16xf32, #tpu.memory_space<vmem>>, %arg4: memref<1x16xf32, #tpu.memory_space<vmem>>, %arg5: memref<2x16xf32, #tpu.memory_space<vmem>>, %arg6: memref<2x16xf32, #tpu.memory_space<vmem>>) attributes {dimension_semantics = [#tpu.dimension_semantics<parallel>, #tpu.dimension_semantics<arbitrary>], iteration_bounds = array<i64: 1, 1>, scalar_prefetch = 0 : i64, scratch_operands = 1 : i64, tpu.core_type = #tpu.core_type<tc>, window_params = [{transform_indices = @transform_0, window_bounds = array<i64: 2, 32, 32>}, {transform_indices = @transform_1, window_bounds = array<i64: 32, 16>}, {pipeline_mode = #tpu.pipeline_mode<synchronous>, transform_indices = @transform_2, window_bounds = array<i64: 1, 16>}, {transform_indices = @transform_3, window_bounds = array<i64: 2, 16>}]} {
    %c0_i32 = arith.constant 0 : i32
    %0 = arith.cmpi eq, %arg1, %c0_i32 : i32
    %1 = arith.extui %0 : i1 to i32
    %c0_i32_0 = arith.constant 0 : i32
    %2 = arith.cmpi ne, %1, %c0_i32_0 : i32
    scf.if %2 {
      %cst_13 = arith.constant 0.000000e+00 : f32
      %15 = vector.broadcast %cst_13 : f32 to vector<2x16xf32>
      %c0_14 = arith.constant 0 : index
      %c0_15 = arith.constant 0 : index
      %16 = vector.load %arg6[%c0_14, %c0_15] : memref<2x16xf32, #tpu.memory_space<vmem>>, vector<2x16xf32>
      tpu.vector_store %arg6[%c0_14, %c0_15], %15 {strides = array<i32>} : memref<2x16xf32, #tpu.memory_space<vmem>>, vector<2x16xf32>,
    } else {
    }
    %c0 = arith.constant 0 : index
    %c0_1 = arith.constant 0 : index
    %c0_2 = arith.constant 0 : index
    %3 = vector.load %arg2[%c0, %c0_1, %c0_2] : memref<2x32x32xf32, #tpu.memory_space<vmem>>, vector<2x32x32xf32>
    %cst = arith.constant dense<0.000000e+00> : vector<2x32xf32>
    %4 = vector.multi_reduction <add>, %3, %cst [2] : vector<2x32x32xf32> to vector<2x32xf32>
    %cst_3 = arith.constant 3.125000e-02 : f32
    %5 = vector.broadcast %cst_3 : f32 to vector<2x32xf32>
    %6 = arith.mulf %4, %5 : vector<2x32xf32>
    %c0_4 = arith.constant 0 : index
    %c0_5 = arith.constant 0 : index
    %7 = vector.load %arg6[%c0_4, %c0_5] : memref<2x16xf32, #tpu.memory_space<vmem>>, vector<2x16xf32>
    %c0_6 = arith.constant 0 : index
    %c0_7 = arith.constant 0 : index
    %8 = vector.load %arg3[%c0_6, %c0_7] : memref<32x16xf32, #tpu.memory_space<vmem>>, vector<32x16xf32>
    %cst_8 = arith.constant dense<0.000000e+00> : vector<2x16xf32>
    %9 = tpu.matmul %6, %8, %cst_8 {dimension_numbers = #tpu.dot_dimension_numbers<[1], [0], [0], [1], [0, 0, 1, 1], [], []>} : vector<2x32xf32>, vector<32x16xf32>, vector<2x16xf32> -> vector<2x16xf32>
    %10 = arith.addf %7, %9 : vector<2x16xf32>
    %c0_9 = arith.constant 0 : index
    %c0_10 = arith.constant 0 : index
    %11 = vector.load %arg6[%c0_9, %c0_10] : memref<2x16xf32, #tpu.memory_space<vmem>>, vector<2x16xf32>
    tpu.vector_store %arg6[%c0_9, %c0_10], %10 {strides = array<i32>} : memref<2x16xf32, #tpu.memory_space<vmem>>, vector<2x16xf32>,
    %c0_i32_11 = arith.constant 0 : i32
    %12 = arith.cmpi eq, %arg1, %c0_i32_11 : i32
    %13 = arith.extui %12 : i1 to i32
    %c0_i32_12 = arith.constant 0 : i32
    %14 = arith.cmpi ne, %13, %c0_i32_12 : i32
    scf.if %14 {
      %c0_13 = arith.constant 0 : index
      %c0_14 = arith.constant 0 : index
      %15 = vector.load %arg6[%c0_13, %c0_14] : memref<2x16xf32, #tpu.memory_space<vmem>>, vector<2x16xf32>
      %c0_15 = arith.constant 0 : index
      %c0_16 = arith.constant 0 : index
      %16 = vector.load %arg4[%c0_15, %c0_16] : memref<1x16xf32, #tpu.memory_space<vmem>>, vector<1x16xf32>
      %17 = vector.broadcast %16 : vector<1x16xf32> to vector<2x16xf32>
      %18 = arith.addf %15, %17 : vector<2x16xf32>
      %c0_17 = arith.constant 0 : index
      %c0_18 = arith.constant 0 : index
      %19 = vector.load %arg5[%c0_17, %c0_18] : memref<2x16xf32, #tpu.memory_space<vmem>>, vector<2x16xf32>
      tpu.vector_store %arg5[%c0_17, %c0_18], %18 {strides = array<i32>} : memref<2x16xf32, #tpu.memory_space<vmem>>, vector<2x16xf32>,
    } else {
    }
    return
  }
  func.func @transform_0(%arg0: i32, %arg1: i32) -> (i32, i32, i32) {
    %c0_i32 = arith.constant 0 : i32
    %c0_i32_0 = arith.constant 0 : i32
    return %arg0, %arg1, %c0_i32 : i32, i32, i32
  }
  func.func @transform_1(%arg0: i32, %arg1: i32) -> (i32, i32) {
    %c0_i32 = arith.constant 0 : i32
    %c0_i32_0 = arith.constant 0 : i32
    return %arg1, %c0_i32 : i32, i32
  }
  func.func @transform_2(%arg0: i32, %arg1: i32) -> (i32, i32) {
    %c0_i32 = arith.constant 0 : i32
    %c0_i32_0 = arith.constant 0 : i32
    %c0_i32_1 = arith.constant 0 : i32
    return %c0_i32, %c0_i32_0 : i32, i32
  }
  func.func @transform_3(%arg0: i32, %arg1: i32) -> (i32, i32) {
    %c0_i32 = arith.constant 0 : i32
    %c0_i32_0 = arith.constant 0 : i32
    return %arg0, %c0_i32 : i32, i32
  }
}

</mosaic_0001>

<llo_original>
// kernel: tpu_custom_call.1
$region0: #{tpu_custom_call.1}
  #allocation0 [shape = 'u32[]', space=smem, size = 0x4, offset = 0x4, fixed_abs, tag = 'smem constant byte address 0x4 - core index']
  #allocation1 [shape = 'u32[72,128]{1,0:T(1,128)}', space=vmem, size = 0x9000, scoped, tag = 'internal scratch']
  #allocation2 [shape = 'f32[2,16]{1,0:T(2,128)}', space=vmem, size = 0x400, scoped, tag = 'scratch operand']
  %s0 = inlined_call_operand.hbm [shape: f32[2,32,32], index: 0, kind: input, shape index: {}]
  %s1 = inlined_call_operand.vmem [shape: f32[32,16], index: 1, kind: input, shape index: {}]
  %s2 = inlined_call_operand.vmem [shape: f32[1,16], index: 2, kind: input, shape index: {}]
  %s3 = inlined_call_operand.hbm [shape: f32[2,16], index: 3, kind: output, shape index: {}]
  %s4 = sld [smem:[#allocation0]]
  $region34: #{tpu_custom_call.1} parent=0
    _
  %s6 = ssub.s32 1, %s4
  %s7 = scalar_select 0, %s6, %s4
  $region1: #{tpu_custom_call.1} parent=0
    #allocation3 [shape = 'u8[32768]{0}', space=vmem, size = 0x8000, scoped, tag = 'input window, operand 0, single buffered']
    #allocation4 [shape = 's32[1]{0}', space=sflag, size = 0x4, scoped, tag = 'scoped memory for tpu_custom_call.1']
    #allocation5 [shape = 's32[1]{0}', space=sflag, size = 0x4, scoped, tag = 'scoped memory for tpu_custom_call.1']
    #allocation6 [shape = 'u8[1024]{0}', space=vmem, size = 0x400, scoped, tag = 'output window, operand 0, single buffered']
    %8 = vsyncpa [#allocation4], 0
    %9 = vsyncpa [#allocation5], 0
    // Predicated region
    $region2: #{tpu_custom_call.1} parent=1 // pred_check
      _
    $region3: #{tpu_custom_call.1} parent=1 // pred_check_branch
      %11 = sbr.rel (0) target = $region5
    $region4: #{tpu_custom_call.1} parent=1 // pred_region
      %13 = vsyncadd [#allocation4], 0
      %s14 = sshll.u32 %s0, 4
      %s15 = int_to_ptr.hbm [resolvable:$true] %s14
      %s16 = sshll.u32 [#allocation3], 4
      %s17 = int_to_ptr.vmem [resolvable:$true] %s16
      %22 = dma.hbm_to_vmem [thread:$0]  %s15, 1024, %s17, [#allocation4], 128, 128, 8
    $region5: #{tpu_custom_call.1} parent=1 // pred_fallthru
      _
    // Predicated region
    $region6: #{tpu_custom_call.1} parent=1 // pred_check
      _
    $region7: #{tpu_custom_call.1} parent=1 // pred_check_branch
      %24 = sbr.rel (0) target = $region9
    $region8: #{tpu_custom_call.1} parent=1 // pred_region
      _
    $region9: #{tpu_custom_call.1} parent=1 // pred_fallthru
      _
    // Predicated region
    $region10: #{tpu_custom_call.1} parent=1 // pred_check
      _
    $region11: #{tpu_custom_call.1} parent=1 // pred_check_branch
      %26 = sbr.rel (0) target = $region13
    $region12: #{tpu_custom_call.1} parent=1 // pred_region
      _
    $region13: #{tpu_custom_call.1} parent=1 // pred_fallthru
      _
    // Predicated region
    $region14: #{tpu_custom_call.1} parent=1 // pred_check
      _
    $region15: #{tpu_custom_call.1} parent=1 // pred_check_branch
      %28 = sbr.rel (0) target = $region17
    $region16: #{tpu_custom_call.1} parent=1 // pred_region
      %30 = dma.done [#allocation4], 1024
    $region17: #{tpu_custom_call.1} parent=1 // pred_fallthru
      _
    %p31 = scmp.eq.s32.totalorder 0, 0
    // Predicated region
    $region18: #{tpu_custom_call.1} parent=1 // pred_check
      %p32 = pneg %p31
    $region19: #{tpu_custom_call.1} parent=1 // pred_check_branch
      %34 = sbr.rel (%p32) target = $region21
    $region20: #{tpu_custom_call.1} parent=1 // pred_region
      %vm35 = vcmask 123904
      %36 = vst.msk [vmem:[#allocation2] sm:$0x3] %vm35, 0.0
    $region21: #{tpu_custom_call.1} parent=1 // pred_fallthru
      _
    %v37 = vld [vmem:[#allocation3] sm:$0xff]
    %v38 = vld [vmem:[#allocation3 + $0x8] sm:$0xff]
    %v39 = vld [vmem:[#allocation3 + $0x10] sm:$0xff]
    %v40 = vld [vmem:[#allocation3 + $0x18] sm:$0xff]
    %v41 = vld [vmem:[#allocation3 + $0x20] sm:$0xff]
    %v42 = vld [vmem:[#allocation3 + $0x28] sm:$0xff]
    %v43 = vld [vmem:[#allocation3 + $0x30] sm:$0xff]
    %v44 = vld [vmem:[#allocation3 + $0x38] sm:$0xff]
    %vm45 = vcmask 261120
    %v46 = vsel %vm45, %v37, 0.0
    %47 = vadd.xlane.f32.xlu0 %v46
    %v48 = vpop.xlane.xlu0 %47
    %v49 = vsel %vm45, %v38, 0.0
    %50 = vadd.xlane.f32.xlu0 %v49
    %v51 = vpop.xlane.xlu0 %50
    %v52 = vsel %vm45, %v39, 0.0
    %53 = vadd.xlane.f32.xlu0 %v52
    %v54 = vpop.xlane.xlu0 %53
    %v55 = vsel %vm45, %v40, 0.0
    %56 = vadd.xlane.f32.xlu0 %v55
    %v57 = vpop.xlane.xlu0 %56
    %v58 = vsel %vm45, %v41, 0.0
    %59 = vadd.xlane.f32.xlu0 %v58
    %v60 = vpop.xlane.xlu0 %59
    %v61 = vsel %vm45, %v42, 0.0
    %62 = vadd.xlane.f32.xlu0 %v61
    %v63 = vpop.xlane.xlu0 %62
    %v64 = vsel %vm45, %v43, 0.0
    %65 = vadd.xlane.f32.xlu0 %v64
    %v66 = vpop.xlane.xlu0 %65
    %v67 = vsel %vm45, %v44, 0.0
    %68 = vadd.xlane.f32.xlu0 %v67
    %v69 = vpop.xlane.xlu0 %68
    %v70 = vmul.f32 %v48, 0.03125
    %v71 = vmul.f32 %v51, 0.03125
    %v72 = vmul.f32 %v54, 0.03125
    %v73 = vmul.f32 %v57, 0.03125
    %v74 = vmul.f32 %v60, 0.03125
    %v75 = vmul.f32 %v63, 0.03125
    %v76 = vmul.f32 %v66, 0.03125
    %v77 = vmul.f32 %v69, 0.03125
    %v78 = vld [vmem:[#allocation2] sm:$0x3]
    %v79 = vld [vmem:[%s1] sm:$0xff]
    %v80 = vld [vmem:[%s1 + $0x8] sm:$0xff]
    %v81 = vld [vmem:[%s1 + $0x10] sm:$0xff]
    %v82 = vld [vmem:[%s1 + $0x18] sm:$0xff]
    %v91 = vlaneseq
    %v92 = vand.u32 %v91, 127
    %v93 = vperm.slane %v70, %v92
    %v94 = vadd.s32 %v92, 4294967288
    %v95 = vperm.slane %v71, %v94
    %vm96 = vcmask 130112
    %v97 = vsel %vm96, %v95, %v93
    %v98 = vadd.s32 %v92, 4294967280
    %v99 = vperm.slane %v72, %v98
    %vm100 = vcmask 195712
    %v101 = vsel %vm100, %v99, %v97
    %v102 = vadd.s32 %v92, 4294967272
    %v103 = vperm.slane %v73, %v102
    %vm104 = vcmask 261312
    %v105 = vsel %vm104, %v103, %v101
    %v106 = vperm.slane %v74, %v92
    %v107 = vperm.slane %v75, %v94
    %v108 = vsel %vm96, %v107, %v106
    %v109 = vperm.slane %v76, %v98
    %v110 = vsel %vm100, %v109, %v108
    %v111 = vperm.slane %v77, %v102
    %v112 = vsel %vm104, %v111, %v110
    %vm113 = vcmask 1041409
    %v114 = vsel %vm113, %v112, %v105
    %v115 = vsel %vm45, %v114, 0
    %117 = vmatpush.msra.mxu0 0.0
    %118 = vmatpush.msra.mxu0 0.0
    %119 = vmatpush.msra.mxu0 0.0
    %120 = vmatpush.msra.mxu0 0.0
    %121 = vmatpush.msra.mxu0 0.0
    %122 = vmatpush.msra.mxu0 0.0
    %123 = vmatpush.msra.mxu0 0.0
    %124 = vmatpush.msra.mxu0 0.0
    %125 = vmatpush.msra.mxu0 0.0
    %126 = vmatpush.msra.mxu0 0.0
    %127 = vmatpush.msra.mxu0 0.0
    %128 = vmatpush.msra.mxu0 0.0
    %129 = vmatpush.msra.mxu0 %v82
    %130 = vmatpush.msra.mxu0 %v81
    %131 = vmatpush.msra.mxu0 %v80
    %132 = vmatpush.msra.mxu0 %v79
    %133 = vmatmul.f32.gmra.mxu0 %v115
    %v134 = vpop.f32.mrf.mxu0
    %v135 = vadd.f32 0.0, %v134
    %136 = vdwg.mxu0
    %v137 = vadd.f32 %v78, %v135
    %vm138 = vcmask 123904
    %139 = vst.msk [vmem:[#allocation2] sm:$0x3] %vm138, %v137
    // Predicated region
    $region22: #{tpu_custom_call.1} parent=1 // pred_check
      %p140 = pneg %p31
    $region23: #{tpu_custom_call.1} parent=1 // pred_check_branch
      %142 = sbr.rel (%p140) target = $region25
    $region24: #{tpu_custom_call.1} parent=1 // pred_region
      %v143 = vld [vmem:[#allocation2] sm:$0x3]
      %v144 = vld [vmem:[%s2] sm:$0x1]
      %v146 = vperm.slane %v144, 0
      %v148 = vadd.f32 %v143, %v146
      %149 = vst.msk [vmem:[#allocation6] sm:$0x3] %vm138, %v148
    $region25: #{tpu_custom_call.1} parent=1 // pred_fallthru
      _
    // Predicated region
    $region26: #{tpu_custom_call.1} parent=1 // pred_check
      _
    $region27: #{tpu_custom_call.1} parent=1 // pred_check_branch
      %151 = sbr.rel (0) target = $region29
    $region28: #{tpu_custom_call.1} parent=1 // pred_region
      %153 = vsyncadd [#allocation5], 0
      %s155 = sshll.u32 [#allocation6], 4
      %s156 = int_to_ptr.vmem [resolvable:$true] %s155
      %s157 = sshll.u32 %s3, 4
      %s158 = int_to_ptr.hbm [resolvable:$true] %s157
      %160 = dma.vmem_to_hbm [thread:$0]  %s156, 32, %s158, [#allocation5]
    $region29: #{tpu_custom_call.1} parent=1 // pred_fallthru
      _
    // Predicated region
    $region30: #{tpu_custom_call.1} parent=1 // pred_check
      _
    $region31: #{tpu_custom_call.1} parent=1 // pred_check_branch
      %162 = sbr.rel (0) target = $region33
    $region32: #{tpu_custom_call.1} parent=1 // pred_region
      %164 = dma.done [#allocation5], 32
    $region33: #{tpu_custom_call.1} parent=1 // pred_fallthru
      _
    %165 = vsyncpa [#allocation4], 1
    %166 = vsyncpa [#allocation5], 1

</llo_original>
